<compile_context>
chip_gen: v5e
topology: v5e:2x2
jax: 0.10.0
libtpu: 0.0.40
codegen_flags: <defaults>
</compile_context>

<pallas_src>
import jax
import jax.numpy as jnp
from jax.experimental import pallas as pl
from jax.experimental.pallas import tpu as pltpu


def _bilinear_matrix(out_size: int, in_size: int) -> jnp.ndarray:
    """M (out_size, in_size) with M @ v == F.interpolate(v, out_size,
    mode='linear', align_corners=True)."""
    assert in_size >= 2, "bilinear matrix requires in_size >= 2"
    if out_size == 1:
        return jnp.zeros((1, in_size), jnp.float32).at[0, 0].set(1.0)
    src = jnp.arange(out_size, dtype=jnp.float32) * (in_size - 1) / (out_size - 1)
    i0 = jnp.clip(jnp.floor(src).astype(jnp.int32), 0, in_size - 2)
    frac = src - i0.astype(jnp.float32)
    rows = jnp.arange(out_size)
    m = jnp.zeros((out_size, in_size), jnp.float32)
    m = m.at[rows, i0].add(1.0 - frac)
    m = m.at[rows, i0 + 1].add(frac)
    return m


def _make_kernel(C: int, H: int, Ho: int, Wo: int, h0: int, w0: int):
    """Kernel closure over static (Python int) shape parameters."""

    def kernel(x_ref, wh_ref, wwt_ref, head_ref, out_ref):
        # x_ref   : VMEM (1, C*H, W)   one batch element, channels folded into rows
        # wh_ref  : VMEM (Ho, H)       bilinear row-resize (align_corners=True)
        # wwt_ref : VMEM (W, Wo)       bilinear column-resize, transposed
        # head_ref: VMEM (K, 2C+1)     1x1-conv head [w_local | w_global | bias]
        # out_ref : VMEM (1, K, Ho*Wo) lane-dense output slab
        x = x_ref[0]                                           # (C*H, W)
        wh = wh_ref[...]                                       # (Ho, H)

        # Global branch: column resize for ALL channels in one MXU matmul.
        gcol = jnp.dot(x, wwt_ref[...],
                       preferred_element_type=jnp.float32)     # (C*H, Wo)

        feats = []
        # Local branch: static center crops (pure data movement, zero FLOPs).
        for c in range(C):
            r0 = c * H + h0
            feats.append(x[r0:r0 + Ho, w0:w0 + Wo])            # (Ho, Wo)
        # Global branch: per-channel row resize (C small MXU matmuls; the row
        # slices start at c*H, sublane-aligned whenever H % 8 == 0).
        for c in range(C):
            feats.append(jnp.dot(wh, gcol[c * H:(c + 1) * H, :],
                                 preferred_element_type=jnp.float32))
        # Constant ones feature so the head matmul also applies the bias on the
        # MXU (no 1-lane bias input, no VPU broadcast-add).
        feats.append(jnp.ones((Ho, Wo), jnp.float32))

        # (2C+1, Ho*Wo) feature matrix; the minor-dim merge is free whenever
        # Wo is a multiple of 128 (true for realistic segmentation shapes).
        f = jnp.stack(feats, axis=0).reshape(2 * C + 1, Ho * Wo)

        # 1x1-conv head: one MXU matmul, lane-dense N = Ho*Wo, single store.
        out_ref[0] = jnp.dot(head_ref[...], f,
                             preferred_element_type=jnp.float32)

    return kernel


@jax.jit
def global_local_net(x, wh, ww, wc, bias):
    """x: (B, C, H, W) f32, wh: (Ho, H), ww: (Wo, W), wc: (K, 2C), bias: (K,)
    -> masks: (B, K, H//2, W//2) f32."""
    B, C, H, W = x.shape
    assert H % 4 == 0 and W % 4 == 0
    Ho, Wo = H // 2, W // 2
    K = wc.shape[0]
    h0, w0 = H // 4, W // 4

    # Tiny grid-invariant operands, built once per call in the wrapper.
    wh_f = wh.astype(jnp.float32)                      # (Ho, H)
    wwt = ww.astype(jnp.float32).T                     # (W, Wo)
    head = jnp.concatenate(                            # (K, 2C+1): bias folded in
        [wc.astype(jnp.float32), bias.astype(jnp.float32)[:, None]], axis=1)

    x2 = x.astype(jnp.float32).reshape(B, C * H, W)    # free reshape (leading dims)

    # ---- shape-derived VMEM budget (per grid step, incl. double buffering) ----
    bpe = 4  # f32 bytes
    in_block = (C * H * W + Ho * H + W * Wo + K * (2 * C + 1)) * bpe
    out_block = K * Ho * Wo * bpe
    interm = (C * H * Wo + 2 * (2 * C + 1) * Ho * Wo + K * Ho * Wo) * bpe
    needed = 2 * (in_block + out_block) + interm       # 2x: pipeline buffers
    try:
        vmem_cap = int(pltpu.get_tpu_info().vmem_capacity_bytes)
    except Exception:
        vmem_cap = 64 * 1024 * 1024                    # v7x has the smallest VMEM
    vmem_limit = int(min(max(2 * needed, 32 * 1024 * 1024), (3 * vmem_cap) // 4))

    kernel = _make_kernel(C, H, Ho, Wo, h0, w0)

    out = pl.pallas_call(
        kernel,
        out_shape=jax.ShapeDtypeStruct((B, K, Ho * Wo), jnp.float32),
        grid=(B,),
        in_specs=[
            pl.BlockSpec((1, C * H, W), lambda b: (b, 0, 0)),
            pl.BlockSpec((Ho, H), lambda b: (0, 0)),
            pl.BlockSpec((W, Wo), lambda b: (0, 0)),
            pl.BlockSpec((K, 2 * C + 1), lambda b: (0, 0)),
        ],
        out_specs=pl.BlockSpec((1, K, Ho * Wo), lambda b: (b, 0, 0)),
        compiler_params=pltpu.CompilerParams(
            dimension_semantics=("parallel",),
            vmem_limit_bytes=vmem_limit),
    )(x2, wh_f, wwt, head)

    return out.reshape(B, K, Ho, Wo)


def _reference(x, wh, ww, wc, bias):
    """Pure-JAX reference of the same forward (crop + bilinear + 1x1 head)."""
    B, C, H, W = x.shape
    Ho, Wo = H // 2, W // 2
    h0, w0 = H // 4, W // 4
    x_local = x[:, :, h0:h0 + Ho, w0:w0 + Wo]
    x_global = jnp.einsum('oh,bchw,vw->bcov', wh, x, ww)
    feats = jnp.concatenate([x_local, x_global], axis=1)        # (B, 2C, Ho, Wo)
    return jnp.einsum('kc,bcov->bkov', wc, feats) + bias[None, :, None, None]


if __name__ == "__main__":
    B, C, H, W = 2, 4, 16, 16
    K = 3  # number of segmentation classes

    key = jax.random.PRNGKey(0)
    kx, kw, kb = jax.random.split(key, 3)

    x = jax.random.normal(kx, (B, C, H, W), dtype=jnp.float32)
    wc = (jax.random.normal(kw, (K, 2 * C), dtype=jnp.float32)
          / jnp.sqrt(2.0 * C))
    bias = jax.random.normal(kb, (K,), dtype=jnp.float32) * 0.01

    # Exact bilinear (align_corners=True) resize matrices: resize = Wh @ X @ Ww^T
    wh = _bilinear_matrix(H // 2, H)
    ww = _bilinear_matrix(W // 2, W)

    out = global_local_net(x, wh, ww, wc, bias)
    jax.block_until_ready(out)
    assert out.shape == (B, K, H // 2, W // 2)

    ref = _reference(x, wh, ww, wc, bias)
    assert jnp.allclose(out, ref, rtol=1e-3, atol=1e-3), (
        float(jnp.max(jnp.abs(out - ref))))
    print("KERNEL_OK")
</pallas_src>

<mosaic_0001>
module attributes {stable_mosaic.version = 11 : i64} {
  func.func @kernel(%arg0: i32, %arg1: memref<1x64x16xf32, #tpu.memory_space<vmem>>, %arg2: memref<8x16xf32, #tpu.memory_space<vmem>>, %arg3: memref<16x8xf32, #tpu.memory_space<vmem>>, %arg4: memref<3x9xf32, #tpu.memory_space<vmem>>, %arg5: memref<1x3x64xf32, #tpu.memory_space<vmem>>) attributes {dimension_semantics = [#tpu.dimension_semantics<parallel>], iteration_bounds = array<i64: 2>, scalar_prefetch = 0 : i64, scratch_operands = 0 : i64, tpu.core_type = #tpu.core_type<tc>, window_params = [{transform_indices = @transform_0, window_bounds = array<i64: 1, 64, 16>}, {pipeline_mode = #tpu.pipeline_mode<synchronous>, transform_indices = @transform_1, window_bounds = array<i64: 8, 16>}, {pipeline_mode = #tpu.pipeline_mode<synchronous>, transform_indices = @transform_2, window_bounds = array<i64: 16, 8>}, {pipeline_mode = #tpu.pipeline_mode<synchronous>, transform_indices = @transform_3, window_bounds = array<i64: 3, 9>}, {transform_indices = @transform_4, window_bounds = array<i64: 1, 3, 64>}]} {
    %c0 = arith.constant 0 : index
    %c0_0 = arith.constant 0 : index
    %c0_1 = arith.constant 0 : index
    %0 = vector.load %arg1[%c0, %c0_0, %c0_1] : memref<1x64x16xf32, #tpu.memory_space<vmem>>, vector<1x64x16xf32>
    %1 = vector.shape_cast %0 : vector<1x64x16xf32> to vector<64x16xf32>
    %c0_2 = arith.constant 0 : index
    %c0_3 = arith.constant 0 : index
    %2 = vector.load %arg2[%c0_2, %c0_3] : memref<8x16xf32, #tpu.memory_space<vmem>>, vector<8x16xf32>
    %c0_4 = arith.constant 0 : index
    %c0_5 = arith.constant 0 : index
    %3 = vector.load %arg3[%c0_4, %c0_5] : memref<16x8xf32, #tpu.memory_space<vmem>>, vector<16x8xf32>
    %cst = arith.constant dense<0.000000e+00> : vector<64x8xf32>
    %4 = tpu.matmul %1, %3, %cst {dimension_numbers = #tpu.dot_dimension_numbers<[1], [0], [0], [1], [0, 0, 1, 1], [], []>} : vector<64x16xf32>, vector<16x8xf32>, vector<64x8xf32> -> vector<64x8xf32>
    %5 = vector.extract_strided_slice %1 {offsets = [4, 4], sizes = [8, 8], strides = [1, 1]} : vector<64x16xf32> to vector<8x8xf32>
    %6 = vector.extract_strided_slice %1 {offsets = [20, 4], sizes = [8, 8], strides = [1, 1]} : vector<64x16xf32> to vector<8x8xf32>
    %7 = vector.extract_strided_slice %1 {offsets = [36, 4], sizes = [8, 8], strides = [1, 1]} : vector<64x16xf32> to vector<8x8xf32>
    %8 = vector.extract_strided_slice %1 {offsets = [52, 4], sizes = [8, 8], strides = [1, 1]} : vector<64x16xf32> to vector<8x8xf32>
    %9 = vector.extract_strided_slice %4 {offsets = [0, 0], sizes = [16, 8], strides = [1, 1]} : vector<64x8xf32> to vector<16x8xf32>
    %cst_6 = arith.constant dense<0.000000e+00> : vector<8x8xf32>
    %10 = tpu.matmul %2, %9, %cst_6 {dimension_numbers = #tpu.dot_dimension_numbers<[1], [0], [0], [1], [0, 0, 1, 1], [], []>} : vector<8x16xf32>, vector<16x8xf32>, vector<8x8xf32> -> vector<8x8xf32>
    %11 = vector.extract_strided_slice %4 {offsets = [16, 0], sizes = [16, 8], strides = [1, 1]} : vector<64x8xf32> to vector<16x8xf32>
    %cst_7 = arith.constant dense<0.000000e+00> : vector<8x8xf32>
    %12 = tpu.matmul %2, %11, %cst_7 {dimension_numbers = #tpu.dot_dimension_numbers<[1], [0], [0], [1], [0, 0, 1, 1], [], []>} : vector<8x16xf32>, vector<16x8xf32>, vector<8x8xf32> -> vector<8x8xf32>
    %13 = vector.extract_strided_slice %4 {offsets = [32, 0], sizes = [16, 8], strides = [1, 1]} : vector<64x8xf32> to vector<16x8xf32>
    %cst_8 = arith.constant dense<0.000000e+00> : vector<8x8xf32>
    %14 = tpu.matmul %2, %13, %cst_8 {dimension_numbers = #tpu.dot_dimension_numbers<[1], [0], [0], [1], [0, 0, 1, 1], [], []>} : vector<8x16xf32>, vector<16x8xf32>, vector<8x8xf32> -> vector<8x8xf32>
    %15 = vector.extract_strided_slice %4 {offsets = [48, 0], sizes = [16, 8], strides = [1, 1]} : vector<64x8xf32> to vector<16x8xf32>
    %cst_9 = arith.constant dense<0.000000e+00> : vector<8x8xf32>
    %16 = tpu.matmul %2, %15, %cst_9 {dimension_numbers = #tpu.dot_dimension_numbers<[1], [0], [0], [1], [0, 0, 1, 1], [], []>} : vector<8x16xf32>, vector<16x8xf32>, vector<8x8xf32> -> vector<8x8xf32>
    %cst_10 = arith.constant 1.000000e+00 : f32
    %17 = vector.broadcast %cst_10 : f32 to vector<8x8xf32>
    %18 = vector.shape_cast %5 : vector<8x8xf32> to vector<1x8x8xf32>
    %19 = vector.shape_cast %6 : vector<8x8xf32> to vector<1x8x8xf32>
    %20 = vector.shape_cast %7 : vector<8x8xf32> to vector<1x8x8xf32>
    %21 = vector.shape_cast %8 : vector<8x8xf32> to vector<1x8x8xf32>
    %22 = vector.shape_cast %10 : vector<8x8xf32> to vector<1x8x8xf32>
    %23 = vector.shape_cast %12 : vector<8x8xf32> to vector<1x8x8xf32>
    %24 = vector.shape_cast %14 : vector<8x8xf32> to vector<1x8x8xf32>
    %25 = vector.shape_cast %16 : vector<8x8xf32> to vector<1x8x8xf32>
    %26 = vector.shape_cast %17 : vector<8x8xf32> to vector<1x8x8xf32>
    %27 = tpu.concatenate %18, %19, %20, %21, %22, %23, %24, %25, %26 in 0 : vector<1x8x8xf32>, vector<1x8x8xf32>, vector<1x8x8xf32>, vector<1x8x8xf32>, vector<1x8x8xf32>, vector<1x8x8xf32>, vector<1x8x8xf32>, vector<1x8x8xf32>, vector<1x8x8xf32> -> vector<9x8x8xf32>
    %28 = vector.shape_cast %27 : vector<9x8x8xf32> to vector<9x64xf32>
    %c0_11 = arith.constant 0 : index
    %c0_12 = arith.constant 0 : index
    %29 = vector.load %arg4[%c0_11, %c0_12] : memref<3x9xf32, #tpu.memory_space<vmem>>, vector<3x9xf32>
    %cst_13 = arith.constant dense<0.000000e+00> : vector<3x64xf32>
    %30 = tpu.matmul %29, %28, %cst_13 {dimension_numbers = #tpu.dot_dimension_numbers<[1], [0], [0], [1], [0, 0, 1, 1], [], []>} : vector<3x9xf32>, vector<9x64xf32>, vector<3x64xf32> -> vector<3x64xf32>
    %c0_14 = arith.constant 0 : index
    %c0_15 = arith.constant 0 : index
    %c0_16 = arith.constant 0 : index
    %31 = vector.load %arg5[%c0_14, %c0_15, %c0_16] : memref<1x3x64xf32, #tpu.memory_space<vmem>>, vector<1x3x64xf32>
    %32 = vector.shape_cast %31 : vector<1x3x64xf32> to vector<3x64xf32>
    %33 = vector.shape_cast %30 : vector<3x64xf32> to vector<1x3x64xf32>
    tpu.vector_store %arg5[%c0_14, %c0_15, %c0_16], %33 {strides = array<i32>} : memref<1x3x64xf32, #tpu.memory_space<vmem>>, vector<1x3x64xf32>,
    return
  }
  func.func @transform_0(%arg0: i32) -> (i32, i32, i32) {
    %c0_i32 = arith.constant 0 : i32
    %c0_i32_0 = arith.constant 0 : i32
    %c0_i32_1 = arith.constant 0 : i32
    return %arg0, %c0_i32, %c0_i32_0 : i32, i32, i32
  }
  func.func @transform_1(%arg0: i32) -> (i32, i32) {
    %c0_i32 = arith.constant 0 : i32
    %c0_i32_0 = arith.constant 0 : i32
    %c0_i32_1 = arith.constant 0 : i32
    return %c0_i32, %c0_i32_0 : i32, i32
  }
  func.func @transform_2(%arg0: i32) -> (i32, i32) {
    %c0_i32 = arith.constant 0 : i32
    %c0_i32_0 = arith.constant 0 : i32
    %c0_i32_1 = arith.constant 0 : i32
    return %c0_i32, %c0_i32_0 : i32, i32
  }
  func.func @transform_3(%arg0: i32) -> (i32, i32) {
    %c0_i32 = arith.constant 0 : i32
    %c0_i32_0 = arith.constant 0 : i32
    %c0_i32_1 = arith.constant 0 : i32
    return %c0_i32, %c0_i32_0 : i32, i32
  }
  func.func @transform_4(%arg0: i32) -> (i32, i32, i32) {
    %c0_i32 = arith.constant 0 : i32
    %c0_i32_0 = arith.constant 0 : i32
    %c0_i32_1 = arith.constant 0 : i32
    return %arg0, %c0_i32, %c0_i32_0 : i32, i32, i32
  }
}

</mosaic_0001>

<llo_original>
// kernel: global_local_net.1
$region0: #{global_local_net.1}
  #allocation0 [shape = 'u32[]', space=smem, size = 0x4, offset = 0x4, fixed_abs, tag = 'smem constant byte address 0x4 - core index']
  #allocation1 [shape = 'u32[72,128]{1,0:T(1,128)}', space=vmem, size = 0x9000, scoped, tag = 'internal scratch']
  %s0 = inlined_call_operand.hbm [shape: f32[2,64,16], index: 0, kind: input, shape index: {}]
  %s1 = inlined_call_operand.vmem [shape: f32[8,16], index: 1, kind: input, shape index: {}]
  %s2 = inlined_call_operand.vmem [shape: f32[16,8], index: 2, kind: input, shape index: {}]
  %s3 = inlined_call_operand.vmem [shape: f32[3,9], index: 3, kind: input, shape index: {}]
  %s4 = inlined_call_operand.vmem [shape: f32[2,3,64], index: 4, kind: output, shape index: {}]
  %s5 = sld [smem:[#allocation0]]
  $region53: #{global_local_net.1} parent=0
    _
  %s7 = ssub.s32 1, %s5
  %s8 = scalar_select 0, %s7, %s5
  $region1: #{global_local_net.1} parent=0
    #allocation2 [shape = 'u8[65536]{0}', space=vmem, size = 0x10000, scoped, tag = 'input window, operand 0']
    #allocation3 [shape = 's32[2]{0}', space=sflag, size = 0x8, scoped, tag = 'scoped memory for global_local_net.1']
    %9 = vsyncpa [#allocation3], 0
    %s10 = scalar_lea.sflag [#allocation3], 1
    %11 = vsyncpa %s10, 0
    loop: start=0, step=1, limit=4
    $region2: #{global_local_net.1} parent=1 // loop_pre_header
      _
    $region3: #{global_local_net.1} parent=1 // loop_header
      %s13 = sphi 0, %s17
      %p14 = scmp.ge.s32.totalorder %s13, 4
      %s23 = sphi 0, %s25
      %s26 = sphi 0, %s23
      %s27 = sphi 0, %s26
      %s43 = sphi 0, %s27
      %s47 = sphi 0, %s47
      %s49 = sphi 0, %s47
      %s50 = sphi 0, %s49
      %s64 = sphi 0, %s50
      %s68 = sphi 0, %s68
      %s70 = sphi 0, %s68
      %s71 = sphi 0, %s70
      %s85 = sphi 0, %s71
      %s89 = sphi 0, %s89
      %s91 = sphi 0, %s89
      %s92 = sphi 0, %s91
      %s106 = sphi 0, %s92
      %s112 = sphi 0, %s114
      %s115 = sphi 0, %s112
      %s116 = sphi 0, %s115
      %s132 = sphi 0, %s116
    $region4: #{global_local_net.1} parent=1 // loop_header_branch
      %16 = sbr.rel (%p14) target = $region8
    $region5: #{global_local_net.1} parent=1 // loop_body
      %s18 = ssub.s32 %s13, 1
      %s19 = ssub.s32 %s13, 2
      %s20 = sadd.s32 %s13, 1
      %s21 = ssub.s32 %s13, %s20
      %p22 = scmp.eq.s32.totalorder %s21, 0
      %s24 = sadd.s32 %s23, 1
      %s25 = scalar_select %p22, %s23, %s24
      %p28 = pneg %p22
      %p29 = scmp.eq.s32.totalorder %s13, 1
      %p30 = por %p28, %p29
      %p31 = scmp.ne.s32.totalorder %s23, %s26
      %p32 = scmp.eq.s32.totalorder %s13, 0
      %p33 = por %p31, %p32
      %p34 = scmp.ne.s32.totalorder %s23, %s26
      %p35 = scmp.eq.s32.totalorder %s18, 1
      %p36 = por %p34, %p35
      %p37 = scmp.ne.s32.totalorder %s26, %s27
      %p38 = scmp.eq.s32.totalorder %s18, 0
      %p39 = por %p37, %p38
      %p40 = scmp.ne.s32.totalorder %s26, %s27
      %p41 = scmp.eq.s32.totalorder %s19, 1
      %p42 = por %p40, %p41
      %p44 = scmp.ne.s32.totalorder %s27, %s43
      %p45 = scmp.eq.s32.totalorder %s19, 0
      %p46 = por %p44, %p45
      %s48 = sadd.s32 %s47, 1
      %p51 = scmp.eq.s32.totalorder %s13, 1
      %p52 = scmp.ne.s32.totalorder %s47, %s49
      %p53 = scmp.eq.s32.totalorder %s13, 0
      %p54 = por %p52, %p53
      %p55 = scmp.ne.s32.totalorder %s47, %s49
      %p56 = scmp.eq.s32.totalorder %s18, 1
      %p57 = por %p55, %p56
      %p58 = scmp.ne.s32.totalorder %s49, %s50
      %p59 = scmp.eq.s32.totalorder %s18, 0
      %p60 = por %p58, %p59
      %p61 = scmp.ne.s32.totalorder %s49, %s50
      %p62 = scmp.eq.s32.totalorder %s19, 1
      %p63 = por %p61, %p62
      %p65 = scmp.ne.s32.totalorder %s50, %s64
      %p66 = scmp.eq.s32.totalorder %s19, 0
      %p67 = por %p65, %p66
      %s69 = sadd.s32 %s68, 1
      %p72 = scmp.eq.s32.totalorder %s13, 1
      %p73 = scmp.ne.s32.totalorder %s68, %s70
      %p74 = scmp.eq.s32.totalorder %s13, 0
      %p75 = por %p73, %p74
      %p76 = scmp.ne.s32.totalorder %s68, %s70
      %p77 = scmp.eq.s32.totalorder %s18, 1
      %p78 = por %p76, %p77
      %p79 = scmp.ne.s32.totalorder %s70, %s71
      %p80 = scmp.eq.s32.totalorder %s18, 0
      %p81 = por %p79, %p80
      %p82 = scmp.ne.s32.totalorder %s70, %s71
      %p83 = scmp.eq.s32.totalorder %s19, 1
      %p84 = por %p82, %p83
      %p86 = scmp.ne.s32.totalorder %s71, %s85
      %p87 = scmp.eq.s32.totalorder %s19, 0
      %p88 = por %p86, %p87
      %s90 = sadd.s32 %s89, 1
      %p93 = scmp.eq.s32.totalorder %s13, 1
      %p94 = scmp.ne.s32.totalorder %s89, %s91
      %p95 = scmp.eq.s32.totalorder %s13, 0
      %p96 = por %p94, %p95
      %p97 = scmp.ne.s32.totalorder %s89, %s91
      %p98 = scmp.eq.s32.totalorder %s18, 1
      %p99 = por %p97, %p98
      %p100 = scmp.ne.s32.totalorder %s91, %s92
      %p101 = scmp.eq.s32.totalorder %s18, 0
      %p102 = por %p100, %p101
      %p103 = scmp.ne.s32.totalorder %s91, %s92
      %p104 = scmp.eq.s32.totalorder %s19, 1
      %p105 = por %p103, %p104
      %p107 = scmp.ne.s32.totalorder %s92, %s106
      %p108 = scmp.eq.s32.totalorder %s19, 0
      %p109 = por %p107, %p108
      %s110 = ssub.s32 %s13, %s20
      %p111 = scmp.eq.s32.totalorder %s110, 0
      %s113 = sadd.s32 %s112, 1
      %s114 = scalar_select %p111, %s112, %s113
      %p117 = pneg %p111
      %p118 = scmp.eq.s32.totalorder %s13, 1
      %p119 = por %p117, %p118
      %p120 = scmp.ne.s32.totalorder %s112, %s115
      %p121 = scmp.eq.s32.totalorder %s13, 0
      %p122 = por %p120, %p121
      %p123 = scmp.ne.s32.totalorder %s112, %s115
      %p124 = scmp.eq.s32.totalorder %s18, 1
      %p125 = por %p123, %p124
      %p126 = scmp.ne.s32.totalorder %s115, %s116
      %p127 = scmp.eq.s32.totalorder %s18, 0
      %p128 = por %p126, %p127
      %p129 = scmp.ne.s32.totalorder %s115, %s116
      %p130 = scmp.eq.s32.totalorder %s19, 1
      %p131 = por %p129, %p130
      %p133 = scmp.ne.s32.totalorder %s116, %s132
      %p134 = scmp.eq.s32.totalorder %s19, 0
      %p135 = por %p133, %p134
      %p136 = scmp.le.s32.totalorder 1, %s13
      %p137 = scmp.lt.s32.totalorder %s13, 3
      %p138 = pnand %p136, %p137
      %p139 = pneg %p138
      // Predicated region
      $region9: #{global_local_net.1} parent=5 // pred_check
        _
      $region10: #{global_local_net.1} parent=5 // pred_check_branch
        %141 = sbr.rel (%p138) target = $region12
      $region11: #{global_local_net.1} parent=5 // pred_region
        %s142 = ssub.s32 %s13, 1
        // Predicated region
        $region13: #{global_local_net.1} parent=11 // pred_check
          %p143 = pneg %p60
        $region14: #{global_local_net.1} parent=11 // pred_check_branch
          %145 = sbr.rel (%p143) target = $region16
        $region15: #{global_local_net.1} parent=11 // pred_region
          _
        $region16: #{global_local_net.1} parent=11 // pred_fallthru
          _
        // Predicated region
        $region17: #{global_local_net.1} parent=11 // pred_check
          %p146 = pneg %p81
        $region18: #{global_local_net.1} parent=11 // pred_check_branch
          %148 = sbr.rel (%p146) target = $region20
        $region19: #{global_local_net.1} parent=11 // pred_region
          _
        $region20: #{global_local_net.1} parent=11 // pred_fallthru
          _
        // Predicated region
        $region21: #{global_local_net.1} parent=11 // pred_check
          %p149 = pneg %p102
        $region22: #{global_local_net.1} parent=11 // pred_check_branch
          %151 = sbr.rel (%p149) target = $region24
        $region23: #{global_local_net.1} parent=11 // pred_region
          _
        $region24: #{global_local_net.1} parent=11 // pred_fallthru
          _
      $region12: #{global_local_net.1} parent=5 // pred_fallthru
        _
      %p152 = scmp.lt.s32.totalorder %s13, 2
      // Predicated region
      $region25: #{global_local_net.1} parent=5 // pred_check
        %p153 = pneg %p152
      $region26: #{global_local_net.1} parent=5 // pred_check_branch
        %155 = sbr.rel (%p153) target = $region28
      $region27: #{global_local_net.1} parent=5 // pred_region
        // Predicated region
        $region29: #{global_local_net.1} parent=27 // pred_check
          %p156 = pneg %p33
        $region30: #{global_local_net.1} parent=27 // pred_check_branch
          %158 = sbr.rel (%p156) target = $region32
        $region31: #{global_local_net.1} parent=27 // pred_region
          %s159 = sand.u32 %s23, 1
          %s160 = scalar_lea.sflag [#allocation3], %s159
          %s161 = sand.u32 %s23, 1
          %s162 = smul.addr %s161, 64
          %s163 = scalar_lea.vmem [#allocation2], %s162
          %165 = vsyncadd %s160, 0
          %s166 = smul.addr %s13, 8
          %s167 = smul.addr %s166, 8
          %s168 = scalar_lea.hbm %s0, %s167
          %s169 = sshll.u32 %s168, 4
          %s170 = int_to_ptr.hbm [resolvable:$true] %s169
          %s171 = sshll.u32 %s163, 4
          %s172 = int_to_ptr.vmem [resolvable:$true] %s171
          %177 = dma.hbm_to_vmem [thread:$0]  %s170, 1024, %s172, %s160, 128, 128, 8
        $region32: #{global_local_net.1} parent=27 // pred_fallthru
          _
      $region28: #{global_local_net.1} parent=5 // pred_fallthru
        _
      %p178 = scmp.le.s32.totalorder 1, %s13
      %p179 = scmp.lt.s32.totalorder %s13, 3
      %p180 = pnand %p178, %p179
      %p181 = pneg %p180
      // Predicated region
      $region33: #{global_local_net.1} parent=5 // pred_check
        _
      $region34: #{global_local_net.1} parent=5 // pred_check_branch
        %183 = sbr.rel (%p180) target = $region36
      $region35: #{global_local_net.1} parent=5 // pred_region
        %s184 = ssub.s32 %s13, 1
        %s185 = sand.u32 %s26, 1
        %s186 = scalar_lea.sflag [#allocation3], %s185
        %s187 = sand.u32 %s26, 1
        %s188 = smul.addr %s187, 64
        %s189 = scalar_lea.vmem [#allocation2], %s188
        // Predicated region
        $region37: #{global_local_net.1} parent=35 // pred_check
          %p190 = pneg %p39
        $region38: #{global_local_net.1} parent=35 // pred_check_branch
          %192 = sbr.rel (%p190) target = $region40
        $region39: #{global_local_net.1} parent=35 // pred_region
          %194 = dma.done %s186, 1024
        $region40: #{global_local_net.1} parent=35 // pred_fallthru
          _
        %s195 = sand.u32 %s26, 1
        %s196 = scalar_lea.sflag [#allocation3], %s195
        %s197 = sand.u32 %s26, 1
        %s198 = smul.addr %s197, 64
        %s199 = scalar_lea.vmem [#allocation2], %s198
        %p200 = pneg %p39
        %p201 = pneg %p36
        %p202 = pneg %p60
        %p203 = pneg %p57
        %p204 = pneg %p81
        %p205 = pneg %p78
        %p206 = pneg %p102
        %p207 = pneg %p99
        %p208 = pneg %p128
        %p209 = pneg %p125
        %p210 = scmp.lt.s32.totalorder %s18, 1
        %s211 = scalar_select %p210, %s18, 1
        %s212 = smul.addr %s211, 4
        %s213 = scalar_lea.vmem %s4, %s212
        %p214 = scmp.lt.s32.totalorder %s18, 1
        %s215 = scalar_select %p214, %s18, 1
        %s216 = smul.addr %s215, 4
        %s217 = scalar_lea.vmem %s4, %s216
        %v218 = vld [vmem:[%s189] sm:$0xff]
        %v219 = vld [vmem:[%s189 + $0x8] sm:$0xff]
        %v220 = vld [vmem:[%s189 + $0x10] sm:$0xff]
        %v221 = vld [vmem:[%s189 + $0x18] sm:$0xff]
        %v222 = vld [vmem:[%s189 + $0x20] sm:$0xff]
        %v223 = vld [vmem:[%s189 + $0x28] sm:$0xff]
        %v224 = vld [vmem:[%s189 + $0x30] sm:$0xff]
        %v225 = vld [vmem:[%s189 + $0x38] sm:$0xff]
        %v226 = vld [vmem:[%s1] sm:$0xff]
        %v227 = vld [vmem:[%s2] sm:$0xff]
        %v228 = vld [vmem:[%s2 + $0x8] sm:$0xff]
        %vm229 = vcmask 130048
        %v231 = vsel %vm229, %v218, 0
        %v234 = vsel %vm229, %v219, 0
        %v237 = vsel %vm229, %v220, 0
        %v240 = vsel %vm229, %v221, 0
        %v243 = vsel %vm229, %v222, 0
        %v246 = vsel %vm229, %v223, 0
        %v249 = vsel %vm229, %v224, 0
        %v252 = vsel %vm229, %v225, 0
        %254 = vmatpush.msra.mxu0 0.0
        %255 = vmatpush.msra.mxu0 0.0
        %256 = vmatpush.msra.mxu0 0.0
        %257 = vmatpush.msra.mxu0 0.0
        %258 = vmatpush.msra.mxu0 0.0
        %259 = vmatpush.msra.mxu0 0.0
        %260 = vmatpush.msra.mxu0 0.0
        %261 = vmatpush.msra.mxu0 0.0
        %262 = vmatpush.msra.mxu0 0.0
        %263 = vmatpush.msra.mxu0 0.0
        %264 = vmatpush.msra.mxu0 0.0
        %265 = vmatpush.msra.mxu0 0.0
        %266 = vmatpush.msra.mxu0 0.0
        %267 = vmatpush.msra.mxu0 0.0
        %268 = vmatpush.msra.mxu0 %v228
        %269 = vmatpush.msra.mxu0 %v227
        %270 = vmatmul.f32.gmra.mxu0 %v231
        %v271 = vpop.f32.mrf.mxu0
        %v272 = vadd.f32 0.0, %v271
        %273 = vmatmul.f32.gmra.mxu0 %v234
        %v274 = vpop.f32.mrf.mxu0
        %v275 = vadd.f32 0.0, %v274
        %276 = vmatmul.f32.gmra.mxu0 %v237
        %v277 = vpop.f32.mrf.mxu0
        %v278 = vadd.f32 0.0, %v277
        %279 = vmatmul.f32.gmra.mxu0 %v240
        %v280 = vpop.f32.mrf.mxu0
        %v281 = vadd.f32 0.0, %v280
        %282 = vmatmul.f32.gmra.mxu0 %v243
        %v283 = vpop.f32.mrf.mxu0
        %v284 = vadd.f32 0.0, %v283
        %285 = vmatmul.f32.gmra.mxu0 %v246
        %v286 = vpop.f32.mrf.mxu0
        %v287 = vadd.f32 0.0, %v286
        %288 = vmatmul.f32.gmra.mxu0 %v249
        %v289 = vpop.f32.mrf.mxu0
        %v290 = vadd.f32 0.0, %v289
        %291 = vmatmul.f32.gmra.mxu0 %v252
        %v292 = vpop.f32.mrf.mxu0
        %v293 = vadd.f32 0.0, %v292
        %294 = vdwg.mxu0
        %v296 = vsel %vm229, %v226, 0
        %298 = vmatpush.msra.mxu0 0.0
        %299 = vmatpush.msra.mxu0 0.0
        %300 = vmatpush.msra.mxu0 0.0
        %301 = vmatpush.msra.mxu0 0.0
        %302 = vmatpush.msra.mxu0 0.0
        %303 = vmatpush.msra.mxu0 0.0
        %304 = vmatpush.msra.mxu0 0.0
        %305 = vmatpush.msra.mxu0 0.0
        %306 = vmatpush.msra.mxu0 0.0
        %307 = vmatpush.msra.mxu0 0.0
        %308 = vmatpush.msra.mxu0 0.0
        %309 = vmatpush.msra.mxu0 0.0
        %310 = vmatpush.msra.mxu0 0.0
        %311 = vmatpush.msra.mxu0 0.0
        %312 = vmatpush.msra.mxu0 %v275
        %313 = vmatpush.msra.mxu0 %v272
        %314 = vmatmul.f32.gmra.mxu0 %v296
        %v315 = vpop.f32.mrf.mxu0
        %v316 = vadd.f32 0.0, %v315
        %317 = vdwg.mxu0
        %318 = vmatpush.msra.mxu0 0.0
        %319 = vmatpush.msra.mxu0 0.0
        %320 = vmatpush.msra.mxu0 0.0
        %321 = vmatpush.msra.mxu0 0.0
        %322 = vmatpush.msra.mxu0 0.0
        %323 = vmatpush.msra.mxu0 0.0
        %324 = vmatpush.msra.mxu0 0.0
        %325 = vmatpush.msra.mxu0 0.0
        %326 = vmatpush.msra.mxu0 0.0
        %327 = vmatpush.msra.mxu0 0.0
        %328 = vmatpush.msra.mxu0 0.0
        %329 = vmatpush.msra.mxu0 0.0
        %330 = vmatpush.msra.mxu0 0.0
        %331 = vmatpush.msra.mxu0 0.0
        %332 = vmatpush.msra.mxu0 %v281
        %333 = vmatpush.msra.mxu0 %v278
        %334 = vmatmul.f32.gmra.mxu0 %v296
        %v335 = vpop.f32.mrf.mxu0
        %v336 = vadd.f32 0.0, %v335
        %337 = vdwg.mxu0
        %338 = vmatpush.msra.mxu0 0.0
        %339 = vmatpush.msra.mxu0 0.0
        %340 = vmatpush.msra.mxu0 0.0
        %341 = vmatpush.msra.mxu0 0.0
        %342 = vmatpush.msra.mxu0 0.0
        %343 = vmatpush.msra.mxu0 0.0
        %344 = vmatpush.msra.mxu0 0.0
        %345 = vmatpush.msra.mxu0 0.0
        %346 = vmatpush.msra.mxu0 0.0
        %347 = vmatpush.msra.mxu0 0.0
        %348 = vmatpush.msra.mxu0 0.0
        %349 = vmatpush.msra.mxu0 0.0
        %350 = vmatpush.msra.mxu0 0.0
        %351 = vmatpush.msra.mxu0 0.0
        %352 = vmatpush.msra.mxu0 %v287
        %353 = vmatpush.msra.mxu0 %v284
        %354 = vmatmul.f32.gmra.mxu0 %v296
        %v355 = vpop.f32.mrf.mxu0
        %v356 = vadd.f32 0.0, %v355
        %357 = vdwg.mxu0
        %358 = vmatpush.msra.mxu0 0.0
        %359 = vmatpush.msra.mxu0 0.0
        %360 = vmatpush.msra.mxu0 0.0
        %361 = vmatpush.msra.mxu0 0.0
        %362 = vmatpush.msra.mxu0 0.0
        %363 = vmatpush.msra.mxu0 0.0
        %364 = vmatpush.msra.mxu0 0.0
        %365 = vmatpush.msra.mxu0 0.0
        %366 = vmatpush.msra.mxu0 0.0
        %367 = vmatpush.msra.mxu0 0.0
        %368 = vmatpush.msra.mxu0 0.0
        %369 = vmatpush.msra.mxu0 0.0
        %370 = vmatpush.msra.mxu0 0.0
        %371 = vmatpush.msra.mxu0 0.0
        %372 = vmatpush.msra.mxu0 %v293
        %373 = vmatpush.msra.mxu0 %v290
        %374 = vmatmul.f32.gmra.mxu0 %v296
        %v375 = vpop.f32.mrf.mxu0
        %v376 = vadd.f32 0.0, %v375
        %377 = vdwg.mxu0
        %v379 = vrot.slane %v316, 4
        %380 = vrot.lane.b32.xlu0 %v379, 4
        %v381 = vpop.permute.xlu0 %380
        %v383 = vrot.slane %v336, 4
        %384 = vrot.lane.b32.xlu0 %v383, 4
        %v385 = vpop.permute.xlu0 %384
        %v387 = vrot.slane %v356, 4
        %388 = vrot.lane.b32.xlu0 %v387, 4
        %v389 = vpop.permute.xlu0 %388
        %v391 = vrot.slane %v376, 4
        %392 = vrot.lane.b32.xlu0 %v391, 4
        %v393 = vpop.permute.xlu0 %392
        %vm395 = vcmask 1043456
        %v396 = vrot.slane %v218, 4
        %v397 = vrot.slane %v219, 4
        %v398 = vsel %vm395, %v396, %v397
        %v399 = vrot.slane %v220, 4
        %v400 = vrot.slane %v221, 4
        %v401 = vsel %vm395, %v399, %v400
        %v402 = vrot.slane %v222, 4
        %v403 = vrot.slane %v223, 4
        %v404 = vsel %vm395, %v402, %v403
        %v405 = vrot.slane %v224, 4
        %v406 = vrot.slane %v225, 4
        %v407 = vsel %vm395, %v405, %v406
        %v408 = vrot.slane %v381, 4
        %v409 = vsel %vm395, %v408, %v408
        %v410 = vrot.slane %v385, 4
        %v411 = vsel %vm395, %v410, %v410
        %v412 = vrot.slane %v389, 4
        %v413 = vsel %vm395, %v412, %v412
        %v414 = vrot.slane %v393, 4
        %v415 = vsel %vm395, %v414, %v414
        %v416 = vrot.slane 1.0, 4
        %v417 = vsel %vm395, %v416, %v416
        %418 = vrot.lane.b32.xlu0 %v398, 124
        %v419 = vpop.permute.xlu0 %418
        %420 = vrot.lane.b32.xlu0 %v401, 124
        %v421 = vpop.permute.xlu0 %420
        %422 = vrot.lane.b32.xlu0 %v404, 124
        %v423 = vpop.permute.xlu0 %422
        %424 = vrot.lane.b32.xlu0 %v407, 124
        %v425 = vpop.permute.xlu0 %424
        %426 = vrot.lane.b32.xlu0 %v409, 124
        %v427 = vpop.permute.xlu0 %426
        %428 = vrot.lane.b32.xlu0 %v411, 124
        %v429 = vpop.permute.xlu0 %428
        %430 = vrot.lane.b32.xlu0 %v413, 124
        %v431 = vpop.permute.xlu0 %430
        %432 = vrot.lane.b32.xlu0 %v415, 124
        %v433 = vpop.permute.xlu0 %432
        %434 = vrot.lane.b32.xlu0 %v417, 124
        %v435 = vpop.permute.xlu0 %434
        %v445 = vrot.slane %v423, 4
        %vm446 = vcmask 1047556
        %v447 = vsel %vm446, %v445, %v419
        %v448 = vrot.slane %v419, 4
        %v449 = vsel %vm446, %v423, %v448
        %v451 = vunpack.c.l.s4 1983009808
        %v452 = vunpack.c.0.s8 %v451
        %v453 = vperm.slane %v447, %v452
        %v455 = vunpack.c.l.s4 1983009808
        %v456 = vunpack.c.0.s8 %v455
        %v457 = vperm.slane %v449, %v456
        %v458 = vrot.slane %v425, 4
        %v459 = vsel %vm446, %v458, %v421
        %v460 = vrot.slane %v421, 4
        %v461 = vsel %vm446, %v425, %v460
        %v463 = vunpack.c.l.s4 1983009808
        %v464 = vunpack.c.0.s8 %v463
        %v465 = vperm.slane %v459, %v464
        %v467 = vunpack.c.l.s4 1983009808
        %v468 = vunpack.c.0.s8 %v467
        %v469 = vperm.slane %v461, %v468
        %v470 = vrot.slane %v431, 4
        %v471 = vsel %vm446, %v470, %v427
        %v472 = vrot.slane %v427, 4
        %v473 = vsel %vm446, %v431, %v472
        %v475 = vunpack.c.l.s4 1983009808
        %v476 = vunpack.c.0.s8 %v475
        %v477 = vperm.slane %v471, %v476
        %v479 = vunpack.c.l.s4 1983009808
        %v480 = vunpack.c.0.s8 %v479
        %v481 = vperm.slane %v473, %v480
        %v482 = vrot.slane %v433, 4
        %v483 = vsel %vm446, %v482, %v429
        %v484 = vrot.slane %v429, 4
        %v485 = vsel %vm446, %v433, %v484
        %v487 = vunpack.c.l.s4 1983009808
        %v488 = vunpack.c.0.s8 %v487
        %v489 = vperm.slane %v483, %v488
        %v491 = vunpack.c.l.s4 1983009808
        %v492 = vunpack.c.0.s8 %v491
        %v493 = vperm.slane %v485, %v492
        %v494 = vrot.slane %v465, 4
        %v495 = vsel %vm446, %v494, %v453
        %v496 = vrot.slane %v453, 4
        %v497 = vsel %vm446, %v465, %v496
        %v499 = vunpack.c.l.s4 1934713408
        %v500 = vunpack.c.0.s8 %v499
        %v501 = vperm.slane %v495, %v500
        %v503 = vunpack.c.l.s4 1934713408
        %v504 = vunpack.c.0.s8 %v503
        %v505 = vperm.slane %v497, %v504
        %v506 = vrot.slane %v469, 4
        %v507 = vsel %vm446, %v506, %v457
        %v508 = vrot.slane %v457, 4
        %v509 = vsel %vm446, %v469, %v508
        %v511 = vunpack.c.l.s4 1934713408
        %v512 = vunpack.c.0.s8 %v511
        %v513 = vperm.slane %v507, %v512
        %v515 = vunpack.c.l.s4 1934713408
        %v516 = vunpack.c.0.s8 %v515
        %v517 = vperm.slane %v509, %v516
        %v518 = vrot.slane %v489, 4
        %v519 = vsel %vm446, %v518, %v477
        %v520 = vrot.slane %v477, 4
        %v521 = vsel %vm446, %v489, %v520
        %v523 = vunpack.c.l.s4 1934713408
        %v524 = vunpack.c.0.s8 %v523
        %v525 = vperm.slane %v519, %v524
        %v527 = vunpack.c.l.s4 1934713408
        %v528 = vunpack.c.0.s8 %v527
        %v529 = vperm.slane %v521, %v528
        %v530 = vrot.slane %v493, 4
        %v531 = vsel %vm446, %v530, %v481
        %v532 = vrot.slane %v481, 4
        %v533 = vsel %vm446, %v493, %v532
        %v535 = vunpack.c.l.s4 1934713408
        %v536 = vunpack.c.0.s8 %v535
        %v537 = vperm.slane %v531, %v536
        %v539 = vunpack.c.l.s4 1934713408
        %v540 = vunpack.c.0.s8 %v539
        %v541 = vperm.slane %v533, %v540
        %v542 = vrot.slane %v525, 4
        %v543 = vsel %vm446, %v542, %v501
        %v544 = vrot.slane %v501, 4
        %v545 = vsel %vm446, %v525, %v544
        %v546 = vrot.slane %v529, 4
        %v547 = vsel %vm446, %v546, %v505
        %v548 = vrot.slane %v505, 4
        %v549 = vsel %vm446, %v529, %v548
        %v550 = vrot.slane %v537, 4
        %v551 = vsel %vm446, %v550, %v513
        %v552 = vrot.slane %v513, 4
        %v553 = vsel %vm446, %v537, %v552
        %v554 = vrot.slane %v541, 4
        %v555 = vsel %vm446, %v554, %v517
        %v556 = vrot.slane %v517, 4
        %v557 = vsel %vm446, %v541, %v556
        %v558 = vrot.slane %v435, 4
        %v559 = vsel %vm446, 0.0, %v558
        %v561 = vunpack.c.l.s4 1983009808
        %v562 = vunpack.c.0.s8 %v561
        %v563 = vperm.slane %v435, %v562
        %v565 = vunpack.c.l.s4 1983009808
        %v566 = vunpack.c.0.s8 %v565
        %v567 = vperm.slane %v559, %v566
        %v568 = vrot.slane %v563, 4
        %v569 = vsel %vm446, 0.0, %v568
        %v571 = vunpack.c.l.s4 1934713408
        %v572 = vunpack.c.0.s8 %v571
        %v573 = vperm.slane %v563, %v572
        %v575 = vunpack.c.l.s4 1934713408
        %v576 = vunpack.c.0.s8 %v575
        %v577 = vperm.slane %v569, %v576
        %v578 = vrot.slane %v567, 4
        %v579 = vsel %vm446, 0.0, %v578
        %v581 = vunpack.c.l.s4 1934713408
        %v582 = vunpack.c.0.s8 %v581
        %v583 = vperm.slane %v567, %v582
        %v585 = vunpack.c.l.s4 1934713408
        %v586 = vunpack.c.0.s8 %v585
        %v587 = vperm.slane %v579, %v586
        %v588 = vrot.slane %v573, 4
        %v589 = vsel %vm446, 0.0, %v588
        %v590 = vrot.slane %v577, 4
        %v591 = vsel %vm446, 0.0, %v590
        %v592 = vrot.slane %v583, 4
        %v593 = vsel %vm446, 0.0, %v592
        %v594 = vrot.slane %v587, 4
        %v595 = vsel %vm446, 0.0, %v594
        %598 = vrot.lane.b32.xlu0 %v545, 8
        %v599 = vpop.permute.xlu0 %598
        %600 = vrot.lane.b32.xlu0 %v589, 8
        %v601 = vpop.permute.xlu0 %600
        %606 = vrot.lane.b32.xlu0 %v547, 16
        %v607 = vpop.permute.xlu0 %606
        %608 = vrot.lane.b32.xlu0 %v577, 16
        %v609 = vpop.permute.xlu0 %608
        %614 = vrot.lane.b32.xlu0 %v549, 24
        %v615 = vpop.permute.xlu0 %614
        %616 = vrot.lane.b32.xlu0 %v591, 24
        %v617 = vpop.permute.xlu0 %616
        %622 = vrot.lane.b32.xlu0 %v551, 32
        %v623 = vpop.permute.xlu0 %622
        %624 = vrot.lane.b32.xlu0 %v583, 32
        %v625 = vpop.permute.xlu0 %624
        %630 = vrot.lane.b32.xlu0 %v553, 40
        %v631 = vpop.permute.xlu0 %630
        %632 = vrot.lane.b32.xlu0 %v593, 40
        %v633 = vpop.permute.xlu0 %632
        %638 = vrot.lane.b32.xlu0 %v555, 48
        %v639 = vpop.permute.xlu0 %638
        %640 = vrot.lane.b32.xlu0 %v587, 48
        %v641 = vpop.permute.xlu0 %640
        %646 = vrot.lane.b32.xlu0 %v557, 56
        %v647 = vpop.permute.xlu0 %646
        %648 = vrot.lane.b32.xlu0 %v595, 56
        %v649 = vpop.permute.xlu0 %648
        %vm652 = vcmask 64512
        %v653 = vsel %vm652, %v543, %v599
        %v654 = vsel %vm652, %v573, %v601
        %v655 = vsel %vm229, %v653, %v607
        %v656 = vsel %vm229, %v654, %v609
        %vm657 = vcmask 195584
        %v658 = vsel %vm657, %v655, %v615
        %v659 = vsel %vm657, %v656, %v617
        %vm660 = vcmask 261120
        %v661 = vsel %vm660, %v658, %v623
        %v662 = vsel %vm660, %v659, %v625
        %vm663 = vcmask 326656
        %v664 = vsel %vm663, %v661, %v631
        %v665 = vsel %vm663, %v662, %v633
        %vm666 = vcmask 392192
        %v667 = vsel %vm666, %v664, %v639
        %v668 = vsel %vm666, %v665, %v641
        %vm669 = vcmask 457728
        %v670 = vsel %vm669, %v667, %v647
        %v671 = vsel %vm669, %v668, %v649
        %v672 = vld [vmem:[%s3] sm:$0x7]
        %vm673 = vcmask 72704
        %v675 = vsel %vm673, %v672, 0
        %vm677 = vcmask 1040384
        %v679 = vsel %vm677, %v671, 0
        %681 = vmatpush.msra.mxu0 0.0
        %682 = vmatpush.msra.mxu0 0.0
        %683 = vmatpush.msra.mxu0 0.0
        %684 = vmatpush.msra.mxu0 0.0
        %685 = vmatpush.msra.mxu0 0.0
        %686 = vmatpush.msra.mxu0 0.0
        %687 = vmatpush.msra.mxu0 0.0
        %688 = vmatpush.msra.mxu0 0.0
        %689 = vmatpush.msra.mxu0 0.0
        %690 = vmatpush.msra.mxu0 0.0
        %691 = vmatpush.msra.mxu0 0.0
        %692 = vmatpush.msra.mxu0 0.0
        %693 = vmatpush.msra.mxu0 0.0
        %694 = vmatpush.msra.mxu0 0.0
        %695 = vmatpush.msra.mxu0 %v679
        %696 = vmatpush.msra.mxu0 %v670
        %697 = vmatmul.f32.gmra.mxu0 %v675
        %v698 = vpop.f32.mrf.mxu0
        %v699 = vadd.f32 0.0, %v698
        %700 = vdwg.mxu0
        %vm701 = vcmask 518144
        %702 = vst.msk [vmem:[%s217] sm:$0x7] %vm701, %v699
        %p703 = scmp.lt.s32.totalorder %s18, 1
        %s704 = scalar_select %p703, %s18, 1
        %s705 = smul.addr %s704, 4
        %s706 = scalar_lea.vmem %s4, %s705
        // Predicated region
        $region41: #{global_local_net.1} parent=35 // pred_check
          %p707 = pneg %p125
        $region42: #{global_local_net.1} parent=35 // pred_check_branch
          %709 = sbr.rel (%p707) target = $region44
        $region43: #{global_local_net.1} parent=35 // pred_region
          _
        $region44: #{global_local_net.1} parent=35 // pred_fallthru
          _
      $region36: #{global_local_net.1} parent=5 // pred_fallthru
        _
      %p710 = scmp.le.s32.totalorder 2, %s13
      // Predicated region
      $region45: #{global_local_net.1} parent=5 // pred_check
        %p711 = pneg %p710
      $region46: #{global_local_net.1} parent=5 // pred_check_branch
        %713 = sbr.rel (%p711) target = $region48
      $region47: #{global_local_net.1} parent=5 // pred_region
        %s714 = ssub.s32 %s13, 2
        // Predicated region
        $region49: #{global_local_net.1} parent=47 // pred_check
          %p715 = pneg %p131
        $region50: #{global_local_net.1} parent=47 // pred_check_branch
          %717 = sbr.rel (%p715) target = $region52
        $region51: #{global_local_net.1} parent=47 // pred_region
          %p718 = scmp.lt.s32.totalorder %s19, 1
          %s719 = scalar_select %p718, %s19, 1
          %s720 = smul.addr %s719, 4
          %s721 = scalar_lea.vmem %s4, %s720
        $region52: #{global_local_net.1} parent=47 // pred_fallthru
          _
      $region48: #{global_local_net.1} parent=5 // pred_fallthru
        _
    $region6: #{global_local_net.1} parent=1 // loop_footer
      %s17 = sadd.s32 1, %s13
    $region7: #{global_local_net.1} parent=1 // loop_footer_branch
      %12 = sbr.rel target = $region3
    $region8: #{global_local_net.1} parent=1 // loop_exit
      _
    %722 = vsyncpa [#allocation3], 1
    %s723 = scalar_lea.sflag [#allocation3], 1
    %724 = vsyncpa %s723, 1

</llo_original>
